<compile_context>
chip_gen: v5e
topology: v5e:2x2
jax: 0.10.0
libtpu: 0.0.40
codegen_flags: <defaults>
</compile_context>

<pallas_src>
import functools

import jax
import jax.numpy as jnp
from jax.experimental import pallas as pl
from jax.experimental.pallas import tpu as pltpu


# Per-grid-step VMEM working-set budget (double-buffered inputs + f32
# temporaries). Conservative enough for v7x's 64 MiB physical VMEM.
_TILE_VMEM_BUDGET_BYTES = 24 * 1024 * 1024
# Scoped VMEM limit requested from the compiler (default is 16/32 MiB which
# would reject or shrink the larger tiles).
_VMEM_LIMIT_BYTES = 48 * 1024 * 1024


def _avg_corr_kernel(out_ref, tgt_ref, corr_ref, *, eps, n):
    """Per-feature-column Pearson correlation for one (N, tile_d) tile."""
    o = out_ref[...].astype(jnp.float32)   # (N, tile_d)
    t = tgt_ref[...].astype(jnp.float32)   # (N, tile_d)

    inv_n = jnp.float32(1.0 / n)
    # Single-pass sufficient statistics (no d_o / d_t temporaries).
    e_o = jnp.sum(o, axis=0, keepdims=True) * inv_n          # E[o]
    e_t = jnp.sum(t, axis=0, keepdims=True) * inv_n          # E[t]
    e_oo = jnp.sum(o * o, axis=0, keepdims=True) * inv_n     # E[o^2]
    e_tt = jnp.sum(t * t, axis=0, keepdims=True) * inv_n     # E[t^2]
    e_ot = jnp.sum(o * t, axis=0, keepdims=True) * inv_n     # E[o*t]

    var_o = jnp.maximum(e_oo - e_o * e_o, 0.0)
    var_t = jnp.maximum(e_tt - e_t * e_t, 0.0)
    cov = e_ot - e_o * e_t

    # rsqrt lowers to the EUP (separate VLIW slot) vs a VPU divide.
    corr_ref[...] = cov * jax.lax.rsqrt(
        (var_o + jnp.float32(eps)) * (var_t + jnp.float32(eps))
    )


def _pick_tile_d(n, d, out_itemsize, tgt_itemsize, budget_bytes):
    """Largest multiple of 128 dividing d whose working set fits the budget."""
    if d <= 128 or d % 128 != 0:
        # Full-extent block along D (always a legal block shape).
        return d
    # Bytes of VMEM per feature column for one grid step:
    #   2 pipeline buffers per input (native dtype) + ~3 live f32 temporaries.
    bytes_per_col = n * (2 * (out_itemsize + tgt_itemsize) + 3 * 4)
    max_tile = max(128, (budget_bytes // max(bytes_per_col, 1)) // 128 * 128)
    tile = min(d, max_tile)
    while d % tile != 0:
        tile -= 128
    return tile


def avg_corr(output, target, eps=1e-12):
    """Pallas implementation of AvgCorr.forward. Returns a scalar float32."""
    assert output.shape == target.shape
    n = output.shape[0]
    # Flatten all non-batch dims into a single feature axis (exact: correlation
    # is computed independently per element across the batch axis). No dtype
    # cast here — upcasting happens inside the kernel, keeping HBM traffic at
    # the input precision.
    out2d = output.reshape(n, -1)
    tgt2d = target.reshape(n, -1)
    d = out2d.shape[1]

    tile_d = _pick_tile_d(
        n, d, out2d.dtype.itemsize, tgt2d.dtype.itemsize, _TILE_VMEM_BUDGET_BYTES
    )
    grid = (d // tile_d,)
    # TODO(synk): for extremely large N (N * 128-column working set > budget)
    # also tile over N and accumulate the five sufficient statistics across an
    # extra "arbitrary" grid axis.

    kernel = functools.partial(_avg_corr_kernel, eps=eps, n=n)

    corrs = pl.pallas_call(
        kernel,
        out_shape=jax.ShapeDtypeStruct((1, d), jnp.float32),
        grid=grid,
        in_specs=[
            pl.BlockSpec((n, tile_d), lambda j: (0, j)),
            pl.BlockSpec((n, tile_d), lambda j: (0, j)),
        ],
        out_specs=pl.BlockSpec((1, tile_d), lambda j: (0, j)),
        compiler_params=pltpu.CompilerParams(
            dimension_semantics=("parallel",),
            vmem_limit_bytes=_VMEM_LIMIT_BYTES,
        ),
    )(out2d, tgt2d)

    # Final tiny reduction (D elements) stays in plain JAX.
    return jnp.mean(corrs)


def _avg_corr_ref(output, target, eps=1e-12):
    """Pure-JAX reference matching the PyTorch module."""
    output = output.reshape(output.shape[0], -1).astype(jnp.float32)
    target = target.reshape(target.shape[0], -1).astype(jnp.float32)
    d_o = output - jnp.mean(output, axis=0, keepdims=True)
    d_t = target - jnp.mean(target, axis=0, keepdims=True)
    var_o = jnp.mean(d_o ** 2, axis=0, keepdims=True)
    var_t = jnp.mean(d_t ** 2, axis=0, keepdims=True)
    corrs = jnp.mean(d_o * d_t, axis=0, keepdims=True) / jnp.sqrt(
        (var_o + eps) * (var_t + eps)
    )
    return jnp.mean(corrs)


if __name__ == "__main__":
    key = jax.random.PRNGKey(0)
    k1, k2 = jax.random.split(key)
    # Small shape implied by the forward: (batch, features)
    N, D = 8, 256
    output = jax.random.normal(k1, (N, D), dtype=jnp.float32)
    # Make target partially correlated with output.
    target = 0.5 * output + 0.5 * jax.random.normal(k2, (N, D), dtype=jnp.float32)

    result = avg_corr(output, target)
    jax.block_until_ready(result)

    ref = _avg_corr_ref(output, target)
    assert jnp.allclose(result, ref, atol=1e-5, rtol=1e-5), (result, ref)

    print("KERNEL_OK")
</pallas_src>

<mosaic_0001>
module attributes {stable_mosaic.version = 11 : i64} {
  func.func @_avg_corr_kernel(%arg0: i32, %arg1: memref<8x256xf32, #tpu.memory_space<vmem>>, %arg2: memref<8x256xf32, #tpu.memory_space<vmem>>, %arg3: memref<1x256xf32, #tpu.memory_space<vmem>>) attributes {dimension_semantics = [#tpu.dimension_semantics<parallel>], iteration_bounds = array<i64: 1>, scalar_prefetch = 0 : i64, scratch_operands = 0 : i64, tpu.core_type = #tpu.core_type<tc>, window_params = [{transform_indices = @transform_0, window_bounds = array<i64: 8, 256>}, {transform_indices = @transform_1, window_bounds = array<i64: 8, 256>}, {transform_indices = @transform_2, window_bounds = array<i64: 1, 256>}]} {
    %c0 = arith.constant 0 : index
    %c0_0 = arith.constant 0 : index
    %0 = vector.load %arg1[%c0, %c0_0] : memref<8x256xf32, #tpu.memory_space<vmem>>, vector<8x256xf32>
    %c0_1 = arith.constant 0 : index
    %c0_2 = arith.constant 0 : index
    %1 = vector.load %arg2[%c0_1, %c0_2] : memref<8x256xf32, #tpu.memory_space<vmem>>, vector<8x256xf32>
    %cst = arith.constant dense<0.000000e+00> : vector<256xf32>
    %2 = vector.multi_reduction <add>, %0, %cst [0] : vector<8x256xf32> to vector<256xf32>
    %3 = vector.shape_cast %2 : vector<256xf32> to vector<1x256xf32>
    %cst_3 = arith.constant 1.250000e-01 : f32
    %4 = vector.broadcast %cst_3 : f32 to vector<1x256xf32>
    %5 = arith.mulf %3, %4 : vector<1x256xf32>
    %cst_4 = arith.constant dense<0.000000e+00> : vector<256xf32>
    %6 = vector.multi_reduction <add>, %1, %cst_4 [0] : vector<8x256xf32> to vector<256xf32>
    %7 = vector.shape_cast %6 : vector<256xf32> to vector<1x256xf32>
    %cst_5 = arith.constant 1.250000e-01 : f32
    %8 = vector.broadcast %cst_5 : f32 to vector<1x256xf32>
    %9 = arith.mulf %7, %8 : vector<1x256xf32>
    %10 = arith.mulf %0, %0 : vector<8x256xf32>
    %cst_6 = arith.constant dense<0.000000e+00> : vector<256xf32>
    %11 = vector.multi_reduction <add>, %10, %cst_6 [0] : vector<8x256xf32> to vector<256xf32>
    %12 = vector.shape_cast %11 : vector<256xf32> to vector<1x256xf32>
    %cst_7 = arith.constant 1.250000e-01 : f32
    %13 = vector.broadcast %cst_7 : f32 to vector<1x256xf32>
    %14 = arith.mulf %12, %13 : vector<1x256xf32>
    %15 = arith.mulf %1, %1 : vector<8x256xf32>
    %cst_8 = arith.constant dense<0.000000e+00> : vector<256xf32>
    %16 = vector.multi_reduction <add>, %15, %cst_8 [0] : vector<8x256xf32> to vector<256xf32>
    %17 = vector.shape_cast %16 : vector<256xf32> to vector<1x256xf32>
    %cst_9 = arith.constant 1.250000e-01 : f32
    %18 = vector.broadcast %cst_9 : f32 to vector<1x256xf32>
    %19 = arith.mulf %17, %18 : vector<1x256xf32>
    %20 = arith.mulf %0, %1 : vector<8x256xf32>
    %cst_10 = arith.constant dense<0.000000e+00> : vector<256xf32>
    %21 = vector.multi_reduction <add>, %20, %cst_10 [0] : vector<8x256xf32> to vector<256xf32>
    %22 = vector.shape_cast %21 : vector<256xf32> to vector<1x256xf32>
    %cst_11 = arith.constant 1.250000e-01 : f32
    %23 = vector.broadcast %cst_11 : f32 to vector<1x256xf32>
    %24 = arith.mulf %22, %23 : vector<1x256xf32>
    %25 = arith.mulf %5, %5 : vector<1x256xf32>
    %26 = arith.subf %14, %25 : vector<1x256xf32>
    %cst_12 = arith.constant 0.000000e+00 : f32
    %27 = vector.broadcast %cst_12 : f32 to vector<1x256xf32>
    %28 = arith.maximumf %26, %27 : vector<1x256xf32>
    %29 = arith.mulf %9, %9 : vector<1x256xf32>
    %30 = arith.subf %19, %29 : vector<1x256xf32>
    %cst_13 = arith.constant 0.000000e+00 : f32
    %31 = vector.broadcast %cst_13 : f32 to vector<1x256xf32>
    %32 = arith.maximumf %30, %31 : vector<1x256xf32>
    %33 = arith.mulf %5, %9 : vector<1x256xf32>
    %34 = arith.subf %24, %33 : vector<1x256xf32>
    %cst_14 = arith.constant 9.99999996E-13 : f32
    %35 = vector.broadcast %cst_14 : f32 to vector<1x256xf32>
    %36 = arith.addf %28, %35 : vector<1x256xf32>
    %cst_15 = arith.constant 9.99999996E-13 : f32
    %37 = vector.broadcast %cst_15 : f32 to vector<1x256xf32>
    %38 = arith.addf %32, %37 : vector<1x256xf32>
    %39 = arith.mulf %36, %38 : vector<1x256xf32>
    %40 = math.rsqrt %39 : vector<1x256xf32>
    %41 = arith.mulf %34, %40 : vector<1x256xf32>
    %c0_16 = arith.constant 0 : index
    %c0_17 = arith.constant 0 : index
    %42 = vector.load %arg3[%c0_16, %c0_17] : memref<1x256xf32, #tpu.memory_space<vmem>>, vector<1x256xf32>
    tpu.vector_store %arg3[%c0_16, %c0_17], %41 {strides = array<i32>} : memref<1x256xf32, #tpu.memory_space<vmem>>, vector<1x256xf32>,
    return
  }
  func.func @transform_0(%arg0: i32) -> (i32, i32) {
    %c0_i32 = arith.constant 0 : i32
    %c0_i32_0 = arith.constant 0 : i32
    return %c0_i32, %arg0 : i32, i32
  }
  func.func @transform_1(%arg0: i32) -> (i32, i32) {
    %c0_i32 = arith.constant 0 : i32
    %c0_i32_0 = arith.constant 0 : i32
    return %c0_i32, %arg0 : i32, i32
  }
  func.func @transform_2(%arg0: i32) -> (i32, i32) {
    %c0_i32 = arith.constant 0 : i32
    %c0_i32_0 = arith.constant 0 : i32
    return %c0_i32, %arg0 : i32, i32
  }
}

</mosaic_0001>

<llo_original>
// kernel: tpu_custom_call.1
$region0: #{tpu_custom_call.1}
  #allocation0 [shape = 'u32[]', space=smem, size = 0x4, offset = 0x4, fixed_abs, tag = 'smem constant byte address 0x4 - core index']
  #allocation1 [shape = 'u32[72,128]{1,0:T(1,128)}', space=vmem, size = 0x9000, scoped, tag = 'internal scratch']
  %s0 = inlined_call_operand.hbm [shape: f32[8,256], index: 0, kind: input, shape index: {}]
  %s1 = inlined_call_operand.hbm [shape: f32[8,256], index: 1, kind: input, shape index: {}]
  %s2 = inlined_call_operand.hbm [shape: f32[1,256], index: 2, kind: output, shape index: {}]
  %s3 = sld [smem:[#allocation0]]
  $region26: #{tpu_custom_call.1} parent=0
    _
  %s5 = ssub.s32 1, %s3
  %s6 = scalar_select 0, %s5, %s3
  $region1: #{tpu_custom_call.1} parent=0
    #allocation2 [shape = 'u8[8192]{0}', space=vmem, size = 0x2000, scoped, tag = 'input window, operand 0, single buffered']
    #allocation3 [shape = 's32[1]{0}', space=sflag, size = 0x4, scoped, tag = 'scoped memory for tpu_custom_call.1']
    #allocation4 [shape = 's32[1]{0}', space=sflag, size = 0x4, scoped, tag = 'scoped memory for tpu_custom_call.1']
    #allocation5 [shape = 'u8[8192]{0}', space=vmem, size = 0x2000, scoped, tag = 'input window, operand 1, single buffered']
    #allocation6 [shape = 's32[1]{0}', space=sflag, size = 0x4, scoped, tag = 'scoped memory for tpu_custom_call.1']
    #allocation7 [shape = 'u8[1024]{0}', space=vmem, size = 0x400, scoped, tag = 'output window, operand 0, single buffered']
    %7 = vsyncpa [#allocation3], 0
    %8 = vsyncpa [#allocation6], 0
    %9 = vsyncpa [#allocation4], 0
    // Predicated region
    $region2: #{tpu_custom_call.1} parent=1 // pred_check
      _
    $region3: #{tpu_custom_call.1} parent=1 // pred_check_branch
      %11 = sbr.rel (0) target = $region5
    $region4: #{tpu_custom_call.1} parent=1 // pred_region
      %13 = vsyncadd [#allocation3], 0
      %s15 = sshll.u32 %s0, 4
      %s16 = int_to_ptr.hbm [resolvable:$true] %s15
      %s17 = sshll.u32 [#allocation2], 4
      %s18 = int_to_ptr.vmem [resolvable:$true] %s17
      %20 = dma.hbm_to_vmem [thread:$0]  %s16, 256, %s18, [#allocation3]
    $region5: #{tpu_custom_call.1} parent=1 // pred_fallthru
      _
    // Predicated region
    $region6: #{tpu_custom_call.1} parent=1 // pred_check
      _
    $region7: #{tpu_custom_call.1} parent=1 // pred_check_branch
      %22 = sbr.rel (0) target = $region9
    $region8: #{tpu_custom_call.1} parent=1 // pred_region
      %24 = vsyncadd [#allocation6], 0
      %s26 = sshll.u32 %s1, 4
      %s27 = int_to_ptr.hbm [resolvable:$true] %s26
      %s28 = sshll.u32 [#allocation5], 4
      %s29 = int_to_ptr.vmem [resolvable:$true] %s28
      %31 = dma.hbm_to_vmem [thread:$0]  %s27, 256, %s29, [#allocation6]
    $region9: #{tpu_custom_call.1} parent=1 // pred_fallthru
      _
    // Predicated region
    $region10: #{tpu_custom_call.1} parent=1 // pred_check
      _
    $region11: #{tpu_custom_call.1} parent=1 // pred_check_branch
      %33 = sbr.rel (0) target = $region13
    $region12: #{tpu_custom_call.1} parent=1 // pred_region
      %35 = dma.done [#allocation3], 256
    $region13: #{tpu_custom_call.1} parent=1 // pred_fallthru
      _
    // Predicated region
    $region14: #{tpu_custom_call.1} parent=1 // pred_check
      _
    $region15: #{tpu_custom_call.1} parent=1 // pred_check_branch
      %37 = sbr.rel (0) target = $region17
    $region16: #{tpu_custom_call.1} parent=1 // pred_region
      %39 = dma.done [#allocation6], 256
    $region17: #{tpu_custom_call.1} parent=1 // pred_fallthru
      _
    %v40 = vld [vmem:[#allocation2] sm:$0xff]
    %v41 = vld [vmem:[#allocation2 + $0x8] sm:$0xff]
    %v42 = vld [vmem:[#allocation5] sm:$0xff]
    %v43 = vld [vmem:[#allocation5 + $0x8] sm:$0xff]
    %v44 = vrot.slane %v40, 4
    %v45 = vadd.f32 %v40, %v44
    %v46 = vrot.slane %v45, 2
    %v47 = vadd.f32 %v45, %v46
    %v48 = vrot.slane %v47, 1
    %v49 = vadd.f32 %v47, %v48
    %v50 = vrot.slane %v41, 4
    %v51 = vadd.f32 %v41, %v50
    %v52 = vrot.slane %v51, 2
    %v53 = vadd.f32 %v51, %v52
    %v54 = vrot.slane %v53, 1
    %v55 = vadd.f32 %v53, %v54
    %v56 = vmul.f32 %v49, 0.125
    %v57 = vmul.f32 %v55, 0.125
    %v58 = vrot.slane %v42, 4
    %v59 = vadd.f32 %v42, %v58
    %v60 = vrot.slane %v59, 2
    %v61 = vadd.f32 %v59, %v60
    %v62 = vrot.slane %v61, 1
    %v63 = vadd.f32 %v61, %v62
    %v64 = vrot.slane %v43, 4
    %v65 = vadd.f32 %v43, %v64
    %v66 = vrot.slane %v65, 2
    %v67 = vadd.f32 %v65, %v66
    %v68 = vrot.slane %v67, 1
    %v69 = vadd.f32 %v67, %v68
    %v70 = vmul.f32 %v63, 0.125
    %v71 = vmul.f32 %v69, 0.125
    %v72 = vmul.f32 %v40, %v40
    %v73 = vmul.f32 %v41, %v41
    %v74 = vrot.slane %v72, 4
    %v75 = vadd.f32 %v72, %v74
    %v76 = vrot.slane %v75, 2
    %v77 = vadd.f32 %v75, %v76
    %v78 = vrot.slane %v77, 1
    %v79 = vadd.f32 %v77, %v78
    %v80 = vrot.slane %v73, 4
    %v81 = vadd.f32 %v73, %v80
    %v82 = vrot.slane %v81, 2
    %v83 = vadd.f32 %v81, %v82
    %v84 = vrot.slane %v83, 1
    %v85 = vadd.f32 %v83, %v84
    %v86 = vmul.f32 %v79, 0.125
    %v87 = vmul.f32 %v85, 0.125
    %v88 = vmul.f32 %v42, %v42
    %v89 = vmul.f32 %v43, %v43
    %v90 = vrot.slane %v88, 4
    %v91 = vadd.f32 %v88, %v90
    %v92 = vrot.slane %v91, 2
    %v93 = vadd.f32 %v91, %v92
    %v94 = vrot.slane %v93, 1
    %v95 = vadd.f32 %v93, %v94
    %v96 = vrot.slane %v89, 4
    %v97 = vadd.f32 %v89, %v96
    %v98 = vrot.slane %v97, 2
    %v99 = vadd.f32 %v97, %v98
    %v100 = vrot.slane %v99, 1
    %v101 = vadd.f32 %v99, %v100
    %v102 = vmul.f32 %v95, 0.125
    %v103 = vmul.f32 %v101, 0.125
    %v104 = vmul.f32 %v40, %v42
    %v105 = vmul.f32 %v41, %v43
    %v106 = vrot.slane %v104, 4
    %v107 = vadd.f32 %v104, %v106
    %v108 = vrot.slane %v107, 2
    %v109 = vadd.f32 %v107, %v108
    %v110 = vrot.slane %v109, 1
    %v111 = vadd.f32 %v109, %v110
    %v112 = vrot.slane %v105, 4
    %v113 = vadd.f32 %v105, %v112
    %v114 = vrot.slane %v113, 2
    %v115 = vadd.f32 %v113, %v114
    %v116 = vrot.slane %v115, 1
    %v117 = vadd.f32 %v115, %v116
    %v118 = vmul.f32 %v111, 0.125
    %v119 = vmul.f32 %v117, 0.125
    %v120 = vmul.f32 %v56, %v56
    %v121 = vmul.f32 %v57, %v57
    %v122 = vsub.f32 %v86, %v120
    %v123 = vsub.f32 %v87, %v121
    %v124 = vmax.f32 %v122, 0.0
    %v125 = vmax.f32 %v123, 0.0
    %v126 = vmul.f32 %v70, %v70
    %v127 = vmul.f32 %v71, %v71
    %v128 = vsub.f32 %v102, %v126
    %v129 = vsub.f32 %v103, %v127
    %v130 = vmax.f32 %v128, 0.0
    %v131 = vmax.f32 %v129, 0.0
    %v132 = vmul.f32 %v56, %v70
    %v133 = vmul.f32 %v57, %v71
    %v134 = vsub.f32 %v118, %v132
    %v135 = vsub.f32 %v119, %v133
    %v136 = vadd.f32 %v124, 1e-12
    %v137 = vadd.f32 %v125, 1e-12
    %v138 = vadd.f32 %v130, 1e-12
    %v139 = vadd.f32 %v131, 1e-12
    %v140 = vmul.f32 %v136, %v138
    %v141 = vmul.f32 %v137, %v139
    %v142 = vrsqrt.pop %v140
    %v143 = vmul.f32 %v142, %v140
    %v144 = vmul.f32 %v143, %v142
    %v145 = vmul.f32 0.5, %v144
    %v146 = vsub.f32 1.5, %v145
    %v147 = vmul.f32 %v142, %v146
    %vm148 = vweird.f32 %v140
    %vm149 = vweird.f32 %v142
    %vm150 = vmor %vm148, %vm149
    %v151 = vsel %vm150, %v142, %v147
    %v152 = vrsqrt.pop %v141
    %v153 = vmul.f32 %v152, %v141
    %v154 = vmul.f32 %v153, %v152
    %v155 = vmul.f32 0.5, %v154
    %v156 = vsub.f32 1.5, %v155
    %v157 = vmul.f32 %v152, %v156
    %vm158 = vweird.f32 %v141
    %vm159 = vweird.f32 %v152
    %vm160 = vmor %vm158, %vm159
    %v161 = vsel %vm160, %v152, %v157
    %v162 = vmul.f32 %v134, %v151
    %v163 = vmul.f32 %v135, %v161
    %v166 = vrot.slane %v163, 7
    %vm167 = vcmask 1040384
    %v168 = vsel %vm167, %v162, %v166
    %v170 = vlaneseq
    %vm171 = vcmp.ge.s32.totalorder %v170, 0
    %vm172 = vcmp.lt.s32.totalorder %v170, 256
    %vm173 = vmand %vm171, %vm172
    %174 = vst.msk [vmem:[#allocation7] sm:$0x3] %vm173, %v168
    // Predicated region
    $region18: #{tpu_custom_call.1} parent=1 // pred_check
      _
    $region19: #{tpu_custom_call.1} parent=1 // pred_check_branch
      %176 = sbr.rel (0) target = $region21
    $region20: #{tpu_custom_call.1} parent=1 // pred_region
      %178 = vsyncadd [#allocation4], 0
      %s180 = sshll.u32 [#allocation7], 4
      %s181 = int_to_ptr.vmem [resolvable:$true] %s180
      %s182 = sshll.u32 %s2, 4
      %s183 = int_to_ptr.hbm [resolvable:$true] %s182
      %185 = dma.vmem_to_hbm [thread:$0]  %s181, 32, %s183, [#allocation4]
    $region21: #{tpu_custom_call.1} parent=1 // pred_fallthru
      _
    // Predicated region
    $region22: #{tpu_custom_call.1} parent=1 // pred_check
      _
    $region23: #{tpu_custom_call.1} parent=1 // pred_check_branch
      %187 = sbr.rel (0) target = $region25
    $region24: #{tpu_custom_call.1} parent=1 // pred_region
      %189 = dma.done [#allocation4], 32
    $region25: #{tpu_custom_call.1} parent=1 // pred_fallthru
      _
    %190 = vsyncpa [#allocation3], 1
    %191 = vsyncpa [#allocation6], 1
    %192 = vsyncpa [#allocation4], 1

</llo_original>
